<compile_context>
chip_gen: v7x
topology: tpu7x:2x2x1
jax: 0.10.0
libtpu: 0.0.40
codegen_flags: <defaults>
</compile_context>

<pallas_src>
import functools

import numpy as np
import jax
import jax.numpy as jnp
from jax.experimental import pallas as pl
from jax.experimental.pallas import tpu as pltpu


# ----------------------------------------------------------------------------
# pltpu.roll direction calibration (one tiny probe kernel, run once, eagerly).
# ----------------------------------------------------------------------------
_ROLL_NUMPY_CONVENTION = None   # True  -> out[i] = x[(i - shift) % n]  (jnp.roll)
                                # False -> out[i] = x[(i + shift) % n]


def _roll_probe_kernel(x_ref, o_ref):
    o_ref[...] = pltpu.roll(x_ref[...], shift=1, axis=1)


def _roll_uses_numpy_convention():
    global _ROLL_NUMPY_CONVENTION
    if _ROLL_NUMPY_CONVENTION is None:
        x = jax.lax.broadcasted_iota(jnp.float32, (8, 128), 1)
        y = pl.pallas_call(
            _roll_probe_kernel,
            out_shape=jax.ShapeDtypeStruct((8, 128), jnp.float32),
        )(x)
        _ROLL_NUMPY_CONVENTION = bool(np.asarray(y)[0, 0] == 127.0)
    return _ROLL_NUMPY_CONVENTION


# Tap enumeration order: t = (ky)*3 + (kx), ky/kx in {0,1,2}, offsets oy/ox = k-1.
_TAP_OFFSETS = tuple((oy, ox) for oy in (-1, 0, 1) for ox in (-1, 0, 1))


@functools.lru_cache(maxsize=None)
def _tap_constants(H, W, numpy_conv):
    """Per-tap lane-roll shifts and zero-padding boundary masks, cached per (H,W)."""
    HW = H * W
    shifts = []
    masks = np.ones((9, 1, HW), np.float32)
    hh, ww = np.meshgrid(np.arange(H), np.arange(W), indexing="ij")
    hh = hh.reshape(-1)
    ww = ww.reshape(-1)
    for t, (oy, ox) in enumerate(_TAP_OFFSETS):
        s = oy * W + ox                       # flattened-spatial offset of this tap
        shifts.append(((-s) % HW) if numpy_conv else (s % HW))
        valid = ((hh + oy >= 0) & (hh + oy < H) &
                 (ww + ox >= 0) & (ww + ox < W))
        masks[t, 0, :] = valid.astype(np.float32)
    return tuple(shifts), masks


# ----------------------------------------------------------------------------
# Fused kernel: one batch element per grid step.
# Activations are laid out (channels, H*W): spatial on lanes, channels on
# sublanes.  A 3x3 conv is 9 MXU matmuls over lane-rotated, boundary-masked
# activations; 1x1 convs are plain matmuls.
# ----------------------------------------------------------------------------
def _grad_update_kernel(scal_ref, masks_ref, x_ref, xp_ref, xo_ref, go_ref,
                        w1a_ref, w1b_ref, w2_ref, w3_ref, wg2_ref, wg3_ref,
                        o_ref, *, roll_shifts):
    a_ae = scal_ref[0]     # alphaAE / gradnorm   (folded on host)
    a_obs = scal_ref[1]    # alphaObs / gradnorm  (folded on host)

    x = x_ref[0]        # (C, HW)
    xp = xp_ref[0]
    xo = xo_ref[0]
    go = go_ref[0]

    # ---- Compute_Grad, GradType == 0, already divided by gradnorm -----------
    grad2 = x - xo                          # x - xobs
    grad = a_ae * (xp - xo) + a_obs * grad2

    def conv3x3(act, w_ref, acc=None):
        """sum_t  W[t] @ (lane-rotated, boundary-masked act)."""
        cout = w_ref.shape[1]
        hw = act.shape[1]
        if acc is None:
            acc = jnp.zeros((cout, hw), jnp.float32)
        for t in range(9):
            if roll_shifts[t] == 0:            # centre tap: no shift, mask == 1
                v = act
            else:
                v = pltpu.roll(act, shift=roll_shifts[t], axis=1)
                v = v * masks_ref[t]           # (1, HW) broadcasts over sublanes
            acc = acc + jnp.dot(w_ref[t], v,
                                preferred_element_type=jnp.float32)
        return acc

    # gradNet1: Conv3x3(2C->8C) over cat([grad_old, grad]) split over the two
    # channel halves (conv is linear in input channels) -> no in-kernel concat.
    h = conv3x3(go, w1a_ref)
    h = conv3x3(grad, w1b_ref, acc=h)
    h = jnp.maximum(h, 0.0)                               # ReLU
    h = jnp.maximum(conv3x3(h, w2_ref), 0.0)              # Conv3x3(8C->16C)+ReLU
    dgrad = conv3x3(h, w3_ref)                            # Conv3x3(16C->C)

    # gradNet2 (1x1 conv) + residual add.
    grad = grad + jnp.dot(wg2_ref[...], dgrad, preferred_element_type=jnp.float32)
    # gradNet3 (1x1 conv); the 0.2 atan pre-scale is folded into wg3 on host.
    o_ref[0] = jnp.dot(wg3_ref[...], grad, preferred_element_type=jnp.float32)


# ----------------------------------------------------------------------------
# Parameters (mirror of model_GradUpdate1.__init__ for len(ShapeData) == 3).
# ----------------------------------------------------------------------------
def init_model_grad_update1_params(shape_data, key):
    C = shape_data[0]
    k1, k2, k3, k4 = jax.random.split(key, 4)

    def conv_w(k, cout, cin, kh, kw):
        fan_in = cin * kh * kw
        return jax.random.normal(k, (cout, cin, kh, kw), jnp.float32) / np.sqrt(fan_in)

    return dict(
        alphaAE=jnp.asarray(1.0, jnp.float32),
        alphaObs=jnp.asarray(1.0, jnp.float32),
        W1=conv_w(k1, 8 * C, 2 * C, 3, 3),     # gradNet1[0]
        W2=conv_w(k2, 16 * C, 8 * C, 3, 3),    # gradNet1[2]
        W3=conv_w(k3, C, 16 * C, 3, 3),        # gradNet1[4]
        Wg2=conv_w(k4, C, C, 1, 1),            # gradNet2
        Wg3=jnp.eye(C, dtype=jnp.float32).reshape(C, C, 1, 1),   # gradNet3 = Id
    )


# ----------------------------------------------------------------------------
# Wrapper: free NCHW -> (N, C, H*W) reshape, constant hoisting, pallas_call.
# ----------------------------------------------------------------------------
def model_grad_update1_forward(params, x, xpred, xobs, mask, grad_old,
                               gradnorm=1.0):
    del mask   # unused by the GradType == 0 branch of Compute_Grad
    N, C, H, W = x.shape
    HW = H * W

    if grad_old is None:
        # torch uses torch.randn here; use a fixed key for determinism.
        grad_old = jax.random.normal(jax.random.PRNGKey(0), x.shape, x.dtype)

    # ---- host-side constants, hoisted out of the kernel hot loop ------------
    roll_shifts, masks_np = _tap_constants(H, W, _roll_uses_numpy_convention())
    masks = jnp.asarray(masks_np)             # (9, 1, HW)

    def taps(w):  # (Cout, Cin, 3, 3) -> (9, Cout, Cin), tap-major (ky, kx)
        cout, cin = w.shape[0], w.shape[1]
        return jnp.transpose(w, (2, 3, 0, 1)).reshape(9, cout, cin)

    w1a = taps(params["W1"][:, :C])           # applied to grad_old
    w1b = taps(params["W1"][:, C:])           # applied to grad
    w2 = taps(params["W2"])
    w3 = taps(params["W3"])
    wg2 = params["Wg2"].reshape(C, C)
    wg3 = 0.2 * params["Wg3"].reshape(C, C)   # fold atan pre-scale into 1x1 weight

    inv_gn = jnp.float32(1.0) / jnp.asarray(gradnorm, jnp.float32)
    scalars = jnp.stack([
        jnp.asarray(params["alphaAE"], jnp.float32) * inv_gn,
        jnp.asarray(params["alphaObs"], jnp.float32) * inv_gn,
    ])

    # Free, contiguous NCHW -> (N, C, H*W) reshape (no HBM transpose/pad).
    xf = x.reshape(N, C, HW).astype(jnp.float32)
    xpf = xpred.reshape(N, C, HW).astype(jnp.float32)
    xof = xobs.reshape(N, C, HW).astype(jnp.float32)
    gof = grad_old.reshape(N, C, HW).astype(jnp.float32)

    kernel = functools.partial(_grad_update_kernel, roll_shifts=roll_shifts)

    batch_block = lambda n: (n, 0, 0)
    const3 = lambda n: (0, 0, 0)
    const2 = lambda n: (0, 0)

    out = pl.pallas_call(
        kernel,
        out_shape=jax.ShapeDtypeStruct((N, C, HW), jnp.float32),
        grid=(N,),
        in_specs=[
            pl.BlockSpec(memory_space=pltpu.MemorySpace.SMEM),   # scalars (2,)
            pl.BlockSpec((9, 1, HW), const3),                    # tap masks
            pl.BlockSpec((1, C, HW), batch_block),               # x
            pl.BlockSpec((1, C, HW), batch_block),               # xpred
            pl.BlockSpec((1, C, HW), batch_block),               # xobs
            pl.BlockSpec((1, C, HW), batch_block),               # grad_old
            pl.BlockSpec((9, 8 * C, C), const3),                 # W1 (grad_old half)
            pl.BlockSpec((9, 8 * C, C), const3),                 # W1 (grad half)
            pl.BlockSpec((9, 16 * C, 8 * C), const3),            # W2
            pl.BlockSpec((9, C, 16 * C), const3),                # W3
            pl.BlockSpec((C, C), const2),                        # gradNet2
            pl.BlockSpec((C, C), const2),                        # gradNet3 (x 0.2)
        ],
        out_specs=pl.BlockSpec((1, C, HW), batch_block),
        compiler_params=pltpu.CompilerParams(
            dimension_semantics=("parallel",)),
    )(scalars, masks, xf, xpf, xof, gof, w1a, w1b, w2, w3, wg2, wg3)

    # Final nonlinearity (kernel already applied the 0.2 pre-scale via wg3).
    return (5.0 * jnp.arctan(out)).reshape(N, C, H, W)


# ----------------------------------------------------------------------------
# Pure-JAX reference (mirror of the PyTorch forward) for correctness checking.
# ----------------------------------------------------------------------------
def reference_forward(params, x, xpred, xobs, mask, grad_old, gradnorm=1.0):
    del mask
    if grad_old is None:
        grad_old = jax.random.normal(jax.random.PRNGKey(0), x.shape, x.dtype)
    a_ae = params["alphaAE"]
    a_obs = params["alphaObs"]
    grad2 = x - xobs
    grad = (xpred - x) + grad2
    grad = a_ae * grad + a_obs * grad2
    grad = grad / gradnorm

    conv = functools.partial(
        jax.lax.conv_general_dilated,
        window_strides=(1, 1),
        dimension_numbers=("NCHW", "OIHW", "NCHW"),
        precision=jax.lax.Precision.HIGHEST)

    grad_all = jnp.concatenate([grad_old, grad], axis=1)
    h = jax.nn.relu(conv(grad_all, params["W1"], padding=((1, 1), (1, 1))))
    h = jax.nn.relu(conv(h, params["W2"], padding=((1, 1), (1, 1))))
    dgrad = conv(h, params["W3"], padding=((1, 1), (1, 1)))
    grad = grad + conv(dgrad, params["Wg2"], padding=((0, 0), (0, 0)))
    return 5.0 * jnp.arctan(0.2 * conv(grad, params["Wg3"], padding=((0, 0), (0, 0))))


if __name__ == "__main__":
    key = jax.random.PRNGKey(0)
    kp, kx, kxp, kxo, kgo, km = jax.random.split(key, 6)

    N, C, H, W = 2, 4, 16, 16             # ShapeData = (C, H, W), batch N
    x = jax.random.normal(kx, (N, C, H, W), jnp.float32)
    xpred = jax.random.normal(kxp, (N, C, H, W), jnp.float32)
    xobs = jax.random.normal(kxo, (N, C, H, W), jnp.float32)
    mask = (jax.random.uniform(km, (N, C, H, W)) > 0.3).astype(jnp.float32)
    grad_old = jax.random.normal(kgo, (N, C, H, W), jnp.float32)
    gradnorm = 2.0

    params = init_model_grad_update1_params((C, H, W), kp)

    out = model_grad_update1_forward(params, x, xpred, xobs, mask, grad_old,
                                     gradnorm=gradnorm)
    out = jax.block_until_ready(out)
    assert out.shape == (N, C, H, W)

    ref = jax.block_until_ready(
        reference_forward(params, x, xpred, xobs, mask, grad_old,
                          gradnorm=gradnorm))
    err = float(jnp.max(jnp.abs(out - ref)))
    assert np.allclose(np.asarray(out), np.asarray(ref), rtol=2e-2, atol=2e-2), (
        f"max |pallas - ref| = {err}")

    print("KERNEL_OK")
</pallas_src>

<mosaic_0001>
module attributes {stable_mosaic.version = 11 : i64} {
  func.func @_roll_probe_kernel(%arg0: memref<8x128xf32, #tpu.memory_space<vmem>>, %arg1: memref<8x128xf32, #tpu.memory_space<vmem>>) attributes {dimension_semantics = [], scalar_prefetch = 0 : i64, scratch_operands = 0 : i64, tpu.core_type = #tpu.core_type<tc>} {
    %c0 = arith.constant 0 : index
    %c0_0 = arith.constant 0 : index
    %0 = vector.load %arg0[%c0, %c0_0] : memref<8x128xf32, #tpu.memory_space<vmem>>, vector<8x128xf32>
    %c1_i32 = arith.constant 1 : i32
    %1 = tpu.dynamic_rotate %0 by %c1_i32 dim 1 : vector<8x128xf32>, i32 -> vector<8x128xf32>
    %c0_1 = arith.constant 0 : index
    %c0_2 = arith.constant 0 : index
    %2 = vector.load %arg1[%c0_1, %c0_2] : memref<8x128xf32, #tpu.memory_space<vmem>>, vector<8x128xf32>
    tpu.vector_store %arg1[%c0_1, %c0_2], %1 {strides = array<i32>} : memref<8x128xf32, #tpu.memory_space<vmem>>, vector<8x128xf32>,
    return
  }
}

</mosaic_0001>

<llo_original>
// kernel: tpu_custom_call.1
$region0: #{tpu_custom_call.1}
  #allocation0 [shape = 'u32[]', space=smem, size = 0x4, offset = 0x4, fixed_abs, tag = 'smem constant byte address 0x4 - core index']
  #allocation1 [shape = 'u32[144,128]{1,0:T(1,128)}', space=vmem, size = 0x12000, scoped, tag = 'internal scratch']
  %s0 = inlined_call_operand.hbm [shape: f32[8,128], index: 0, kind: input, shape index: {}]
  %s1 = inlined_call_operand.hbm [shape: f32[8,128], index: 1, kind: output, shape index: {}]
  %s2 = sld [smem:[#allocation0]]
  $region18: #{tpu_custom_call.1} parent=0
    _
  %s4 = ssub.s32 1, %s2
  %s5 = scalar_select 0, %s4, %s2
  $region1: #{tpu_custom_call.1} parent=0
    #allocation2 [shape = 'u8[4096]{0}', space=vmem, size = 0x1000, scoped, tag = 'input window, operand 0, single buffered']
    #allocation3 [shape = 's32[1]{0}', space=sflag, size = 0x4, scoped, tag = 'scoped memory for tpu_custom_call.1']
    #allocation4 [shape = 's32[1]{0}', space=sflag, size = 0x4, scoped, tag = 'scoped memory for tpu_custom_call.1']
    #allocation5 [shape = 'u8[4096]{0}', space=vmem, size = 0x1000, scoped, tag = 'output window, operand 0, single buffered']
    %6 = vsyncpa [#allocation3], 0
    %7 = vsyncpa [#allocation4], 0
    // Predicated region
    $region2: #{tpu_custom_call.1} parent=1 // pred_check
      _
    $region3: #{tpu_custom_call.1} parent=1 // pred_check_branch
      %9 = sbr.rel (0) target = $region5
    $region4: #{tpu_custom_call.1} parent=1 // pred_region
      %s11 = ssub.s32 128, 128
      %12 = vsyncadd [#allocation3], %s11
      %s14 = sshll.u32 [#allocation2], 4
      %s15 = int_to_ptr.vmem [resolvable:$true] %s14
      %17 = dma.hbm_to_vmem [thread:$0]  %s0, 128, %s15, [#allocation3]
    $region5: #{tpu_custom_call.1} parent=1 // pred_fallthru
      _
    // Predicated region
    $region6: #{tpu_custom_call.1} parent=1 // pred_check
      _
    $region7: #{tpu_custom_call.1} parent=1 // pred_check_branch
      %19 = sbr.rel (0) target = $region9
    $region8: #{tpu_custom_call.1} parent=1 // pred_region
      %20 = dma.done [#allocation3], 128
    $region9: #{tpu_custom_call.1} parent=1 // pred_fallthru
      _
    %v21 = vld [vmem:[#allocation2] sm:$0xff]
    %22 = vrot.lane.b32.xlu0 %v21, 1
    %v23 = vpop.permute.xlu0 %22
    %24 = vst [vmem:[#allocation5] sm:$0xff] %v23
    // Predicated region
    $region10: #{tpu_custom_call.1} parent=1 // pred_check
      _
    $region11: #{tpu_custom_call.1} parent=1 // pred_check_branch
      %26 = sbr.rel (0) target = $region13
    $region12: #{tpu_custom_call.1} parent=1 // pred_region
      %s28 = ssub.s32 128, 128
      %29 = vsyncadd [#allocation4], %s28
      %s31 = sshll.u32 [#allocation5], 4
      %s32 = int_to_ptr.vmem [resolvable:$true] %s31
      %34 = dma.vmem_to_hbm [thread:$0]  %s32, 128, %s1, [#allocation4]
    $region13: #{tpu_custom_call.1} parent=1 // pred_fallthru
      _
    // Predicated region
    $region14: #{tpu_custom_call.1} parent=1 // pred_check
      _
    $region15: #{tpu_custom_call.1} parent=1 // pred_check_branch
      %36 = sbr.rel (0) target = $region17
    $region16: #{tpu_custom_call.1} parent=1 // pred_region
      %37 = dma.done [#allocation4], 128
    $region17: #{tpu_custom_call.1} parent=1 // pred_fallthru
      _
    %38 = vsyncpa [#allocation3], 1
    %39 = vsyncpa [#allocation4], 1

</llo_original>
